<compile_context>
chip_gen: v6e
topology: v6e:2x2x1
jax: 0.10.0
libtpu: 0.0.40
codegen_flags: <defaults>
</compile_context>

<pallas_src>
import functools
import math

import jax
import jax.numpy as jnp
from jax import lax
from jax.experimental import pallas as pl
from jax.experimental.pallas import tpu as pltpu


def _round_up(x, m):
    return ((x + m - 1) // m) * m


def _pick_row_tile(M, row_tile=512):
    """Row tile for the linear kernels.

    Aim for >= 4 grid blocks (>= 2 per TensorCore on dual-TC v7x, and enough steps
    for the prefetch/compute/writeback pipeline on v5e/v6e), rounded to 256 when
    large (fills the 256-row MXU on v6e/v7x) and to 16 otherwise (bf16 sublane
    packing), capped at `row_tile`.
    """
    if M <= 16:
        return 16
    target = pl.cdiv(M, 4)
    mult = 256 if target >= 256 else 16
    tm = _round_up(target, mult)
    return int(min(tm, row_tile, _round_up(M, 16)))


# ----------------------------------------------------------------------------
# Kernel 1: row-tiled linear layer  y = x @ W + b   (bf16 out, f32 accumulation)
# ----------------------------------------------------------------------------
def _linear_kernel(x_ref, w_ref, b_ref, o_ref):
    # x_ref: (tm, Fin) f32, w_ref: (Fin, Fout) bf16, b_ref: (1, Fout) f32
    x = x_ref[...].astype(jnp.bfloat16)                       # MXU is bf16-native
    acc = jnp.dot(x, w_ref[...], preferred_element_type=jnp.float32)
    o_ref[...] = (acc + b_ref[...]).astype(o_ref.dtype)       # bias add in f32


def _linear(x2d, w_bf16, b_f32, *, out_dtype=jnp.bfloat16, row_tile=512):
    """x2d: (M, Fin) f32.  w_bf16: (Fin, Fout) bf16.  b_f32: (1, Fout) f32."""
    M, Fin = x2d.shape
    Fout = w_bf16.shape[1]

    tm = _pick_row_tile(M, row_tile)
    Mp = _round_up(M, tm)
    if Mp != M:                                  # pad instead of asserting divisibility
        x2d = jnp.pad(x2d, ((0, Mp - M), (0, 0)))

    grid = (Mp // tm,)
    flops = 2 * Mp * Fin * Fout
    bytes_accessed = Mp * Fin * 4 + Fin * Fout * 2 + Fout * 4 + Mp * Fout * 2
    # VMEM: double-buffered x/out tiles + (conservatively double-buffered) W, bias.
    vmem_est = (2 * tm * Fin * 4 + 2 * tm * Fout * 2
                + 2 * Fin * Fout * 2 + 2 * Fout * 4)
    vmem_limit = int(min(max(2 * vmem_est, 4 << 20), 32 << 20))   # v7x-safe cap

    out = pl.pallas_call(
        _linear_kernel,
        out_shape=jax.ShapeDtypeStruct((Mp, Fout), out_dtype),
        grid_spec=pltpu.PrefetchScalarGridSpec(
            num_scalar_prefetch=0,
            grid=grid,
            in_specs=[
                pl.BlockSpec((tm, Fin), lambda i: (i, 0)),     # x tile (streamed)
                pl.BlockSpec((Fin, Fout), lambda i: (0, 0)),   # W (resident)
                pl.BlockSpec((1, Fout), lambda i: (0, 0)),     # b (resident)
            ],
            out_specs=pl.BlockSpec((tm, Fout), lambda i: (i, 0)),
        ),
        compiler_params=pltpu.CompilerParams(
            dimension_semantics=("parallel",),
            vmem_limit_bytes=vmem_limit),
        cost_estimate=pl.CostEstimate(
            flops=int(flops), transcendentals=0,
            bytes_accessed=int(bytes_accessed)),
    )(x2d, w_bf16, b_f32)
    return out[:M] if Mp != M else out


# ----------------------------------------------------------------------------
# Kernel 2: attention + fused output projection, grid (batch, head)
# ----------------------------------------------------------------------------
def _attn_out_kernel(*refs, scale, use_mask):
    if use_mask:
        q_ref, k_ref, v_ref, wo_ref, bo_ref, mask_ref, o_ref, acc_ref = refs
    else:
        q_ref, k_ref, v_ref, wo_ref, bo_ref, o_ref, acc_ref = refs
        mask_ref = None

    h = pl.program_id(1)

    @pl.when(h == 0)
    def _init():
        acc_ref[...] = jnp.zeros_like(acc_ref)

    q = q_ref[...]                               # (L, hd) bf16 (projection output)
    k = k_ref[...]
    v = v_ref[...]

    # Module does q *= hd**-0.5 and divides scores by sqrt(hd): combined 1/hd.
    # Contraction on the last dim of both operands (q @ k^T) is MXU-native.
    s = lax.dot_general(q, k, (((1,), (1,)), ((), ())),
                        preferred_element_type=jnp.float32) * scale
    if use_mask:
        # masked_fill semantics: replace masked keys with -1e9 (mask_ref is (1, L)).
        s = jnp.where(mask_ref[...] == 0, -1e9, s)

    # dropout(attention weights) is identity in eval mode.
    s = s - jnp.max(s, axis=-1, keepdims=True)
    p = jnp.exp(s)                               # unnormalized weights
    inv = pl.reciprocal(jnp.sum(p, axis=-1, keepdims=True), approx=True)  # EUP

    ctx = jnp.dot(p.astype(jnp.bfloat16), v, preferred_element_type=jnp.float32)
    ctx = (ctx * inv).astype(jnp.bfloat16)       # normalize (L, hd), not (L, L)

    # Fused output projection: accumulate ctx_h @ Wo[h*hd:(h+1)*hd, :] over heads.
    acc_ref[...] += jnp.dot(ctx, wo_ref[...], preferred_element_type=jnp.float32)

    @pl.when(h == pl.num_programs(1) - 1)
    def _finish():
        o_ref[...] = (acc_ref[...] + bo_ref[...]).astype(o_ref.dtype)


def _head_spec(L, hd, col_block_offset):
    # Head h of a (B, L, n*F) activation = lane-aligned column block (offset + h).
    return pl.BlockSpec((None, L, hd),
                        lambda b, h, off=col_block_offset: (b, 0, off + h))


def _attention_out_proj(q_arr, k_arr, v_arr, offs, wo3, bo, mask3, *,
                        scale, L, H, hd, F, out_dtype=jnp.float32):
    """q/k/v_arr: (B, L, n*F) bf16 (possibly the same fused QKV array).
    offs: head-block offsets (in units of hd) into the last axis for q, k, v.
    wo3: (H, hd, F) bf16.  bo: (1, F) f32.  mask3: optional (B, 1, L) int32."""
    B = q_arr.shape[0]
    use_mask = mask3 is not None

    in_specs = [
        _head_spec(L, hd, offs[0]),                          # q head block
        _head_spec(L, hd, offs[1]),                          # k head block
        _head_spec(L, hd, offs[2]),                          # v head block
        pl.BlockSpec((None, hd, F), lambda b, h: (h, 0, 0)),  # Wo slice per head
        pl.BlockSpec((1, F), lambda b, h: (0, 0)),            # bo (resident)
    ]
    inputs = [q_arr, k_arr, v_arr, wo3, bo]
    if use_mask:
        in_specs.append(pl.BlockSpec((None, 1, L), lambda b, h: (b, 0, 0)))
        inputs.append(mask3)

    flops = B * H * (4 * L * L * hd + 2 * L * hd * F)
    transcendentals = B * H * (L * L + L)
    bytes_accessed = (3 * B * H * L * hd * 2 + H * hd * F * 2 + F * 4
                      + B * L * F * 4 + (B * L * 4 if use_mask else 0))
    vmem_est = (2 * 3 * L * hd * 2          # q/k/v head blocks (bf16, 2-buffered)
                + 2 * hd * F * 2            # Wo slice
                + 2 * F * 4                 # bias
                + 2 * L * F * 4             # output block
                + L * F * 4                 # f32 accumulator scratch
                + 4 * L * L)                # f32 score temp
    vmem_limit = int(min(max(2 * vmem_est, 4 << 20), 32 << 20))   # v7x-safe cap

    return pl.pallas_call(
        functools.partial(_attn_out_kernel, scale=scale, use_mask=use_mask),
        out_shape=jax.ShapeDtypeStruct((B, L, F), out_dtype),
        grid_spec=pltpu.PrefetchScalarGridSpec(
            num_scalar_prefetch=0,
            grid=(B, H),
            in_specs=in_specs,
            out_specs=pl.BlockSpec((None, L, F), lambda b, h: (b, 0, 0)),
            scratch_shapes=[pltpu.VMEM((L, F), jnp.float32)],
        ),
        compiler_params=pltpu.CompilerParams(
            dimension_semantics=("parallel", "arbitrary"),   # heads = reduction
            vmem_limit_bytes=vmem_limit),
        cost_estimate=pl.CostEstimate(
            flops=int(flops), transcendentals=int(transcendentals),
            bytes_accessed=int(bytes_accessed)),
    )(*inputs)


# ----------------------------------------------------------------------------
# Full MultiHeadAttention forward
# ----------------------------------------------------------------------------
def multi_head_attention(q, k, v, params, *, head_num, mask=None, row_tile=512):
    """q, k, v: (B, L, F) f32.  mask: optional (B, L) int (0 = ignore key).  -> (B, L, F) f32."""
    B, L, F = q.shape
    assert F % head_num == 0
    hd = F // head_num
    assert hd % 128 == 0, "head_dim must be a multiple of 128 for this kernel"
    scale = 1.0 / hd                             # combined double scaling of the module

    # In production these casts/concats live in parameter preparation, not per call.
    wq = params["wq"].astype(jnp.bfloat16)
    wk = params["wk"].astype(jnp.bfloat16)
    wv = params["wv"].astype(jnp.bfloat16)
    bq = params["bq"].reshape(1, F).astype(jnp.float32)
    bk = params["bk"].reshape(1, F).astype(jnp.float32)
    bv = params["bv"].reshape(1, F).astype(jnp.float32)

    if (q is k) and (k is v):
        # Self-attention: one fused QKV projection (x read once, 3F-wide MXU tiles,
        # single launch).  Heads of q/k/v are addressed by BlockSpec column offsets.
        w_qkv = jnp.concatenate([wq, wk, wv], axis=1)          # (F, 3F) bf16
        b_qkv = jnp.concatenate([bq, bk, bv], axis=1)          # (1, 3F) f32
        qkv = _linear(q.reshape(B * L, F), w_qkv, b_qkv,
                      row_tile=row_tile).reshape(B, L, 3 * F)  # bf16
        q_arr = k_arr = v_arr = qkv
        offs = (0, head_num, 2 * head_num)
    else:
        q_arr = _linear(q.reshape(B * L, F), wq, bq, row_tile=row_tile).reshape(B, L, F)
        k_arr = _linear(k.reshape(B * L, F), wk, bk, row_tile=row_tile).reshape(B, L, F)
        v_arr = _linear(v.reshape(B * L, F), wv, bv, row_tile=row_tile).reshape(B, L, F)
        offs = (0, 0, 0)

    # Output projection weight, split per head for the fused epilogue (free reshape).
    wo3 = params["wo"].astype(jnp.bfloat16).reshape(head_num, hd, F)
    bo = params["bo"].reshape(1, F).astype(jnp.float32)

    mask3 = None if mask is None else mask.reshape(B, 1, L).astype(jnp.int32)

    return _attention_out_proj(q_arr, k_arr, v_arr, offs, wo3, bo, mask3,
                               scale=scale, L=L, H=head_num, hd=hd, F=F)


# ----------------------------------------------------------------------------
# Parameter init (mirrors nn.Linear U(-1/sqrt(fan_in), 1/sqrt(fan_in))),
# weights stored as (in, out) == transpose of PyTorch's weight.
# ----------------------------------------------------------------------------
def init_params(key, features_dim):
    keys = jax.random.split(key, 8)
    bound = 1.0 / math.sqrt(features_dim)

    def lin(kw, kb):
        w = jax.random.uniform(kw, (features_dim, features_dim), jnp.float32,
                               -bound, bound)
        b = jax.random.uniform(kb, (1, features_dim), jnp.float32, -bound, bound)
        return w, b

    wq, bq = lin(keys[0], keys[1])
    wk, bk = lin(keys[2], keys[3])
    wv, bv = lin(keys[4], keys[5])
    wo, bo = lin(keys[6], keys[7])
    return dict(wq=wq, bq=bq, wk=wk, bk=bk, wv=wv, bv=bv, wo=wo, bo=bo)


# ----------------------------------------------------------------------------
# Pure-JAX f32 reference, faithful to the PyTorch forward
# ----------------------------------------------------------------------------
def mha_reference(q, k, v, params, head_num, mask=None):
    B, L, F = q.shape
    hd = F // head_num

    def lin(x, w, b):
        return x @ w + b

    def split(x):
        return x.reshape(B, L, head_num, hd).transpose(0, 2, 1, 3)

    qh = split(lin(q, params["wq"], params["bq"]))
    kh = split(lin(k, params["wk"], params["bk"]))
    vh = split(lin(v, params["wv"], params["bv"]))
    qh = qh * (hd ** -0.5)
    w_ = jnp.einsum("bhqd,bhkd->bhqk", qh, kh) / math.sqrt(hd)
    if mask is not None:
        w_ = jnp.where(mask[:, None, None, :] == 0, -1e9, w_)
    p = jax.nn.softmax(w_, axis=-1)              # dropout is identity in eval mode
    ctx = jnp.einsum("bhqk,bhkd->bhqd", p, vh).transpose(0, 2, 1, 3).reshape(B * L, F)
    return lin(ctx, params["wo"], params["bo"]).reshape(B, L, F)


if __name__ == "__main__":
    batch_num, data_len = 2, 16
    features_dim, head_num = 256, 2              # head_dim = 128 (lane-aligned)

    key = jax.random.PRNGKey(0)
    kx, kq, kk, kv, kp = jax.random.split(key, 5)
    x = jax.random.normal(kx, (batch_num, data_len, features_dim), jnp.float32)
    q = jax.random.normal(kq, (batch_num, data_len, features_dim), jnp.float32)
    k = jax.random.normal(kk, (batch_num, data_len, features_dim), jnp.float32)
    v = jax.random.normal(kv, (batch_num, data_len, features_dim), jnp.float32)
    params = init_params(kp, features_dim)

    # --- self-attention path (q = k = v): fused QKV projection, no mask ---
    out = multi_head_attention(x, x, x, params, head_num=head_num)
    out = jax.block_until_ready(out)
    ref = mha_reference(x, x, x, params, head_num)
    assert out.shape == (batch_num, data_len, features_dim)
    assert jnp.allclose(out, ref, atol=3e-2, rtol=3e-2), \
        float(jnp.max(jnp.abs(out - ref)))

    # --- general path (distinct q/k/v) with a (B, L) key mask, 0 = ignore key ---
    mask = jnp.ones((batch_num, data_len), jnp.int32).at[1, -4:].set(0)
    out_m = jax.block_until_ready(
        multi_head_attention(q, k, v, params, head_num=head_num, mask=mask))
    ref_m = mha_reference(q, k, v, params, head_num, mask=mask)
    assert jnp.allclose(out_m, ref_m, atol=3e-2, rtol=3e-2), \
        float(jnp.max(jnp.abs(out_m - ref_m)))

    print("KERNEL_OK")
</pallas_src>

<mosaic_0001>
module attributes {stable_mosaic.version = 11 : i64} {
  func.func @_linear_kernel(%arg0: i32, %arg1: memref<16x256xf32, #tpu.memory_space<vmem>>, %arg2: memref<256x768xbf16, #tpu.memory_space<vmem>>, %arg3: memref<1x768xf32, #tpu.memory_space<vmem>>, %arg4: memref<16x768xbf16, #tpu.memory_space<vmem>>) attributes {dimension_semantics = [#tpu.dimension_semantics<parallel>], iteration_bounds = array<i64: 2>, scalar_prefetch = 0 : i64, scratch_operands = 0 : i64, tpu.core_type = #tpu.core_type<tc>, window_params = [{transform_indices = @transform_0, window_bounds = array<i64: 16, 256>}, {pipeline_mode = #tpu.pipeline_mode<synchronous>, transform_indices = @transform_1, window_bounds = array<i64: 256, 768>}, {pipeline_mode = #tpu.pipeline_mode<synchronous>, transform_indices = @transform_2, window_bounds = array<i64: 1, 768>}, {transform_indices = @transform_3, window_bounds = array<i64: 16, 768>}]} {
    %c0 = arith.constant 0 : index
    %c0_0 = arith.constant 0 : index
    %0 = vector.load %arg1[%c0, %c0_0] : memref<16x256xf32, #tpu.memory_space<vmem>>, vector<16x256xf32>
    %1 = arith.truncf %0 : vector<16x256xf32> to vector<16x256xbf16>
    %c0_1 = arith.constant 0 : index
    %c0_2 = arith.constant 0 : index
    %2 = vector.load %arg2[%c0_1, %c0_2] : memref<256x768xbf16, #tpu.memory_space<vmem>>, vector<256x768xbf16>
    %cst = arith.constant dense<0.000000e+00> : vector<16x768xf32>
    %3 = tpu.matmul %1, %2, %cst {dimension_numbers = #tpu.dot_dimension_numbers<[1], [0], [0], [1], [0, 0, 1, 1], [], []>} : vector<16x256xbf16>, vector<256x768xbf16>, vector<16x768xf32> -> vector<16x768xf32>
    %c0_3 = arith.constant 0 : index
    %c0_4 = arith.constant 0 : index
    %4 = vector.load %arg3[%c0_3, %c0_4] : memref<1x768xf32, #tpu.memory_space<vmem>>, vector<1x768xf32>
    %5 = vector.broadcast %4 : vector<1x768xf32> to vector<16x768xf32>
    %6 = arith.addf %3, %5 : vector<16x768xf32>
    %7 = arith.truncf %6 : vector<16x768xf32> to vector<16x768xbf16>
    %c0_5 = arith.constant 0 : index
    %c0_6 = arith.constant 0 : index
    %8 = vector.load %arg4[%c0_5, %c0_6] : memref<16x768xbf16, #tpu.memory_space<vmem>>, vector<16x768xbf16>
    tpu.vector_store %arg4[%c0_5, %c0_6], %7 {strides = array<i32>} : memref<16x768xbf16, #tpu.memory_space<vmem>>, vector<16x768xbf16>,
    return
  }
  func.func @transform_0(%arg0: i32) -> (i32, i32) {
    %c0_i32 = arith.constant 0 : i32
    %c0_i32_0 = arith.constant 0 : i32
    return %arg0, %c0_i32 : i32, i32
  }
  func.func @transform_1(%arg0: i32) -> (i32, i32) {
    %c0_i32 = arith.constant 0 : i32
    %c0_i32_0 = arith.constant 0 : i32
    %c0_i32_1 = arith.constant 0 : i32
    return %c0_i32, %c0_i32_0 : i32, i32
  }
  func.func @transform_2(%arg0: i32) -> (i32, i32) {
    %c0_i32 = arith.constant 0 : i32
    %c0_i32_0 = arith.constant 0 : i32
    %c0_i32_1 = arith.constant 0 : i32
    return %c0_i32, %c0_i32_0 : i32, i32
  }
  func.func @transform_3(%arg0: i32) -> (i32, i32) {
    %c0_i32 = arith.constant 0 : i32
    %c0_i32_0 = arith.constant 0 : i32
    return %arg0, %c0_i32 : i32, i32
  }
}

</mosaic_0001>

<llo_original>
// kernel: tpu_custom_call.1
$region0: #{tpu_custom_call.1}
  #allocation0 [shape = 'u32[]', space=smem, size = 0x4, offset = 0x4, fixed_abs, tag = 'smem constant byte address 0x4 - core index']
  #allocation1 [shape = 'u32[144,128]{1,0:T(1,128)}', space=vmem, size = 0x12000, scoped, tag = 'internal scratch']
  %s0 = inlined_call_operand.hbm [shape: f32[32,256], index: 0, kind: input, shape index: {}]
  %s1 = inlined_call_operand.hbm [shape: bf16[256,768], index: 1, kind: input, shape index: {}]
  %s2 = inlined_call_operand.hbm [shape: f32[1,768], index: 2, kind: input, shape index: {}]
  %s3 = inlined_call_operand.hbm [shape: bf16[32,768], index: 3, kind: output, shape index: {}]
  %s4 = sld [smem:[#allocation0]]
  $region57: #{tpu_custom_call.1} parent=0
    _
  %s6 = ssub.s32 1, %s4
  %s7 = scalar_select 0, %s6, %s4
  $region1: #{tpu_custom_call.1} parent=0
    #allocation2 [shape = 'u8[32768]{0}', space=vmem, size = 0x8000, scoped, tag = 'input window, operand 0']
    #allocation3 [shape = 's32[2]{0}', space=sflag, size = 0x8, scoped, tag = 'scoped memory for tpu_custom_call.1']
    #allocation4 [shape = 's32[2]{0}', space=sflag, size = 0x8, scoped, tag = 'scoped memory for tpu_custom_call.1']
    #allocation5 [shape = 'u8[393216]{0}', space=vmem, size = 0x60000, scoped, tag = 'input window, operand 1, single buffered']
    #allocation6 [shape = 's32[1]{0}', space=sflag, size = 0x4, scoped, tag = 'scoped memory for tpu_custom_call.1']
    #allocation7 [shape = 'u8[3072]{0}', space=vmem, size = 0xc00, scoped, tag = 'input window, operand 2, single buffered']
    #allocation8 [shape = 'u8[49152]{0}', space=vmem, size = 0xc000, scoped, tag = 'output window, operand 0']
    %8 = vsyncpa [#allocation3], 0
    %s9 = scalar_lea.sflag [#allocation3], 1
    %10 = vsyncpa %s9, 0
    %11 = vsyncpa [#allocation6], 0
    %12 = vsyncpa [#allocation4], 0
    %s13 = scalar_lea.sflag [#allocation4], 1
    %14 = vsyncpa %s13, 0
    loop: start=0, step=1, limit=4
    $region2: #{tpu_custom_call.1} parent=1 // loop_pre_header
      _
    $region3: #{tpu_custom_call.1} parent=1 // loop_header
      %s16 = sphi 0, %s20
      %p17 = scmp.ge.s32.totalorder %s16, 4
      %s26 = sphi 0, %s28
      %s29 = sphi 0, %s26
      %s30 = sphi 0, %s29
      %s46 = sphi 0, %s30
      %s50 = sphi 0, %s50
      %s52 = sphi 0, %s50
      %s53 = sphi 0, %s52
      %s67 = sphi 0, %s53
      %s71 = sphi 0, %s71
      %s73 = sphi 0, %s71
      %s74 = sphi 0, %s73
      %s88 = sphi 0, %s74
      %s94 = sphi 0, %s96
      %s97 = sphi 0, %s94
      %s98 = sphi 0, %s97
      %s114 = sphi 0, %s98
    $region4: #{tpu_custom_call.1} parent=1 // loop_header_branch
      %19 = sbr.rel (%p17) target = $region8
    $region5: #{tpu_custom_call.1} parent=1 // loop_body
      %s21 = ssub.s32 %s16, 1
      %s22 = ssub.s32 %s16, 2
      %s23 = sadd.s32 %s16, 1
      %s24 = ssub.s32 %s16, %s23
      %p25 = scmp.eq.s32.totalorder %s24, 0
      %s27 = sadd.s32 %s26, 1
      %s28 = scalar_select %p25, %s26, %s27
      %p31 = pneg %p25
      %p32 = scmp.eq.s32.totalorder %s16, 1
      %p33 = por %p31, %p32
      %p34 = scmp.ne.s32.totalorder %s26, %s29
      %p35 = scmp.eq.s32.totalorder %s16, 0
      %p36 = por %p34, %p35
      %p37 = scmp.ne.s32.totalorder %s26, %s29
      %p38 = scmp.eq.s32.totalorder %s21, 1
      %p39 = por %p37, %p38
      %p40 = scmp.ne.s32.totalorder %s29, %s30
      %p41 = scmp.eq.s32.totalorder %s21, 0
      %p42 = por %p40, %p41
      %p43 = scmp.ne.s32.totalorder %s29, %s30
      %p44 = scmp.eq.s32.totalorder %s22, 1
      %p45 = por %p43, %p44
      %p47 = scmp.ne.s32.totalorder %s30, %s46
      %p48 = scmp.eq.s32.totalorder %s22, 0
      %p49 = por %p47, %p48
      %s51 = sadd.s32 %s50, 1
      %p54 = scmp.eq.s32.totalorder %s16, 1
      %p55 = scmp.ne.s32.totalorder %s50, %s52
      %p56 = scmp.eq.s32.totalorder %s16, 0
      %p57 = por %p55, %p56
      %p58 = scmp.ne.s32.totalorder %s50, %s52
      %p59 = scmp.eq.s32.totalorder %s21, 1
      %p60 = por %p58, %p59
      %p61 = scmp.ne.s32.totalorder %s52, %s53
      %p62 = scmp.eq.s32.totalorder %s21, 0
      %p63 = por %p61, %p62
      %p64 = scmp.ne.s32.totalorder %s52, %s53
      %p65 = scmp.eq.s32.totalorder %s22, 1
      %p66 = por %p64, %p65
      %p68 = scmp.ne.s32.totalorder %s53, %s67
      %p69 = scmp.eq.s32.totalorder %s22, 0
      %p70 = por %p68, %p69
      %s72 = sadd.s32 %s71, 1
      %p75 = scmp.eq.s32.totalorder %s16, 1
      %p76 = scmp.ne.s32.totalorder %s71, %s73
      %p77 = scmp.eq.s32.totalorder %s16, 0
      %p78 = por %p76, %p77
      %p79 = scmp.ne.s32.totalorder %s71, %s73
      %p80 = scmp.eq.s32.totalorder %s21, 1
      %p81 = por %p79, %p80
      %p82 = scmp.ne.s32.totalorder %s73, %s74
      %p83 = scmp.eq.s32.totalorder %s21, 0
      %p84 = por %p82, %p83
      %p85 = scmp.ne.s32.totalorder %s73, %s74
      %p86 = scmp.eq.s32.totalorder %s22, 1
      %p87 = por %p85, %p86
      %p89 = scmp.ne.s32.totalorder %s74, %s88
      %p90 = scmp.eq.s32.totalorder %s22, 0
      %p91 = por %p89, %p90
      %s92 = ssub.s32 %s16, %s23
      %p93 = scmp.eq.s32.totalorder %s92, 0
      %s95 = sadd.s32 %s94, 1
      %s96 = scalar_select %p93, %s94, %s95
      %p99 = pneg %p93
      %p100 = scmp.eq.s32.totalorder %s16, 1
      %p101 = por %p99, %p100
      %p102 = scmp.ne.s32.totalorder %s94, %s97
      %p103 = scmp.eq.s32.totalorder %s16, 0
      %p104 = por %p102, %p103
      %p105 = scmp.ne.s32.totalorder %s94, %s97
      %p106 = scmp.eq.s32.totalorder %s21, 1
      %p107 = por %p105, %p106
      %p108 = scmp.ne.s32.totalorder %s97, %s98
      %p109 = scmp.eq.s32.totalorder %s21, 0
      %p110 = por %p108, %p109
      %p111 = scmp.ne.s32.totalorder %s97, %s98
      %p112 = scmp.eq.s32.totalorder %s22, 1
      %p113 = por %p111, %p112
      %p115 = scmp.ne.s32.totalorder %s98, %s114
      %p116 = scmp.eq.s32.totalorder %s22, 0
      %p117 = por %p115, %p116
      %p118 = scmp.le.s32.totalorder 1, %s16
      %p119 = scmp.lt.s32.totalorder %s16, 3
      %p120 = pnand %p118, %p119
      %p121 = pneg %p120
      // Predicated region
      $region9: #{tpu_custom_call.1} parent=5 // pred_check
        _
      $region10: #{tpu_custom_call.1} parent=5 // pred_check_branch
        %123 = sbr.rel (%p120) target = $region12
      $region11: #{tpu_custom_call.1} parent=5 // pred_region
        %s124 = ssub.s32 %s16, 1
        // Predicated region
        $region13: #{tpu_custom_call.1} parent=11 // pred_check
          %p125 = pneg %p63
        $region14: #{tpu_custom_call.1} parent=11 // pred_check_branch
          %127 = sbr.rel (%p125) target = $region16
        $region15: #{tpu_custom_call.1} parent=11 // pred_region
          %s129 = ssub.s32 12288, 12288
          %130 = vsyncadd [#allocation6], %s129
          %s131 = sshll.u32 [#allocation5], 4
          %s132 = int_to_ptr.vmem [resolvable:$true] %s131
          %137 = dma.hbm_to_vmem [thread:$0]  %s1, 12288, %s132, [#allocation6], 384, 384, 24
        $region16: #{tpu_custom_call.1} parent=11 // pred_fallthru
          _
        // Predicated region
        $region17: #{tpu_custom_call.1} parent=11 // pred_check
          %p138 = pneg %p84
        $region18: #{tpu_custom_call.1} parent=11 // pred_check_branch
          %140 = sbr.rel (%p138) target = $region20
        $region19: #{tpu_custom_call.1} parent=11 // pred_region
          %s142 = ssub.s32 96, 96
          %143 = vsyncadd [#allocation6], %s142
          %s145 = sshll.u32 [#allocation7], 4
          %s146 = int_to_ptr.vmem [resolvable:$true] %s145
          %148 = dma.hbm_to_vmem [thread:$0]  %s2, 96, %s146, [#allocation6]
        $region20: #{tpu_custom_call.1} parent=11 // pred_fallthru
          _
      $region12: #{tpu_custom_call.1} parent=5 // pred_fallthru
        _
      %p149 = scmp.lt.s32.totalorder %s16, 2
      // Predicated region
      $region21: #{tpu_custom_call.1} parent=5 // pred_check
        %p150 = pneg %p149
      $region22: #{tpu_custom_call.1} parent=5 // pred_check_branch
        %152 = sbr.rel (%p150) target = $region24
      $region23: #{tpu_custom_call.1} parent=5 // pred_region
        // Predicated region
        $region25: #{tpu_custom_call.1} parent=23 // pred_check
          %p153 = pneg %p36
        $region26: #{tpu_custom_call.1} parent=23 // pred_check_branch
          %155 = sbr.rel (%p153) target = $region28
        $region27: #{tpu_custom_call.1} parent=23 // pred_region
          %s156 = sand.u32 %s26, 1
          %s157 = scalar_lea.sflag [#allocation3], %s156
          %s158 = sand.u32 %s26, 1
          %s159 = smul.addr %s158, 32
          %s160 = scalar_lea.vmem [#allocation2], %s159
          %s161 = smul.u32 2, %s16
          %s163 = ssub.s32 512, 512
          %164 = vsyncadd %s157, %s163
          %s165 = smul.addr %s161, 2
          %s166 = smul.addr %s165, 128
          %s167 = scalar_lea.hbm %s0, %s166
          %s168 = sshll.u32 %s160, 4
          %s169 = int_to_ptr.vmem [resolvable:$true] %s168
          %174 = dma.hbm_to_vmem [thread:$0]  %s167, 512, %s169, %s157, 256, 256, 16
        $region28: #{tpu_custom_call.1} parent=23 // pred_fallthru
          _
      $region24: #{tpu_custom_call.1} parent=5 // pred_fallthru
        _
      %p175 = scmp.le.s32.totalorder 1, %s16
      %p176 = scmp.lt.s32.totalorder %s16, 3
      %p177 = pnand %p175, %p176
      %p178 = pneg %p177
      // Predicated region
      $region29: #{tpu_custom_call.1} parent=5 // pred_check
        _
      $region30: #{tpu_custom_call.1} parent=5 // pred_check_branch
        %180 = sbr.rel (%p177) target = $region32
      $region31: #{tpu_custom_call.1} parent=5 // pred_region
        %s181 = ssub.s32 %s16, 1
        %s182 = sand.u32 %s29, 1
        %s183 = scalar_lea.sflag [#allocation3], %s182
        %s184 = sand.u32 %s29, 1
        %s185 = smul.addr %s184, 32
        %s186 = scalar_lea.vmem [#allocation2], %s185
        // Predicated region
        $region33: #{tpu_custom_call.1} parent=31 // pred_check
          %p187 = pneg %p42
        $region34: #{tpu_custom_call.1} parent=31 // pred_check_branch
          %189 = sbr.rel (%p187) target = $region36
        $region35: #{tpu_custom_call.1} parent=31 // pred_region
          %190 = dma.done %s183, 512
        $region36: #{tpu_custom_call.1} parent=31 // pred_fallthru
          _
        // Predicated region
        $region37: #{tpu_custom_call.1} parent=31 // pred_check
          %p191 = pneg %p63
        $region38: #{tpu_custom_call.1} parent=31 // pred_check_branch
          %193 = sbr.rel (%p191) target = $region40
        $region39: #{tpu_custom_call.1} parent=31 // pred_region
          %194 = dma.done [#allocation6], 12288
        $region40: #{tpu_custom_call.1} parent=31 // pred_fallthru
          _
        // Predicated region
        $region41: #{tpu_custom_call.1} parent=31 // pred_check
          %p195 = pneg %p84
        $region42: #{tpu_custom_call.1} parent=31 // pred_check_branch
          %197 = sbr.rel (%p195) target = $region44
        $region43: #{tpu_custom_call.1} parent=31 // pred_region
          %198 = dma.done [#allocation6], 96
        $region44: #{tpu_custom_call.1} parent=31 // pred_fallthru
          _
        %s199 = sand.u32 %s29, 1
        %s200 = scalar_lea.sflag [#allocation3], %s199
        %s201 = sand.u32 %s29, 1
        %s202 = smul.addr %s201, 32
        %s203 = scalar_lea.vmem [#allocation2], %s202
        %p204 = pneg %p42
        %p205 = pneg %p39
        %p206 = pneg %p63
        %p207 = pneg %p60
        %p208 = pneg %p84
        %p209 = pneg %p81
        %p210 = pneg %p110
        %p211 = pneg %p107
        %s212 = sand.u32 %s97, 1
        %s213 = scalar_lea.sflag [#allocation4], %s212
        %s214 = sand.u32 %s97, 1
        %s215 = smul.addr %s214, 48
        %s216 = scalar_lea.vmem [#allocation8], %s215
        %s217 = smul.u32 2, %s21
        %s218 = smul.u32 2, %s21
        %v219 = vld [vmem:[%s186] sm:$0xff]
        %v220 = vld [vmem:[%s186 + $0x8] sm:$0xff]
        %v221 = vld [vmem:[%s186 + $0x10] sm:$0xff]
        %v222 = vld [vmem:[%s186 + $0x18] sm:$0xff]
        %v223 = vpack.c.bf16 %v221, %v219
        %v224 = vpack.c.bf16 %v222, %v220
        %v225 = vld [vmem:[#allocation5] sm:$0xff]
        %v226 = vld [vmem:[#allocation5 + $0x8] sm:$0xff]
        %v227 = vld [vmem:[#allocation5 + $0x10] sm:$0xff]
        %v228 = vld [vmem:[#allocation5 + $0x18] sm:$0xff]
        %v229 = vld [vmem:[#allocation5 + $0x20] sm:$0xff]
        %v230 = vld [vmem:[#allocation5 + $0x28] sm:$0xff]
        %v231 = vld [vmem:[#allocation5 + $0x30] sm:$0xff]
        %v232 = vld [vmem:[#allocation5 + $0x38] sm:$0xff]
        %v233 = vld [vmem:[#allocation5 + $0x40] sm:$0xff]
        %v234 = vld [vmem:[#allocation5 + $0x48] sm:$0xff]
        %v235 = vld [vmem:[#allocation5 + $0x50] sm:$0xff]
        %v236 = vld [vmem:[#allocation5 + $0x58] sm:$0xff]
        %v237 = vld [vmem:[#allocation5 + $0x60] sm:$0xff]
        %v238 = vld [vmem:[#allocation5 + $0x68] sm:$0xff]
        %v239 = vld [vmem:[#allocation5 + $0x70] sm:$0xff]
        %v240 = vld [vmem:[#allocation5 + $0x78] sm:$0xff]
        %v241 = vld [vmem:[#allocation5 + $0x80] sm:$0xff]
        %v242 = vld [vmem:[#allocation5 + $0x88] sm:$0xff]
        %v243 = vld [vmem:[#allocation5 + $0x90] sm:$0xff]
        %v244 = vld [vmem:[#allocation5 + $0x98] sm:$0xff]
        %v245 = vld [vmem:[#allocation5 + $0xa0] sm:$0xff]
        %v246 = vld [vmem:[#allocation5 + $0xa8] sm:$0xff]
        %v247 = vld [vmem:[#allocation5 + $0xb0] sm:$0xff]
        %v248 = vld [vmem:[#allocation5 + $0xb8] sm:$0xff]
        %v249 = vld [vmem:[#allocation5 + $0xc0] sm:$0xff]
        %v250 = vld [vmem:[#allocation5 + $0xc8] sm:$0xff]
        %v251 = vld [vmem:[#allocation5 + $0xd0] sm:$0xff]
        %v252 = vld [vmem:[#allocation5 + $0xd8] sm:$0xff]
        %v253 = vld [vmem:[#allocation5 + $0xe0] sm:$0xff]
        %v254 = vld [vmem:[#allocation5 + $0xe8] sm:$0xff]
        %v255 = vld [vmem:[#allocation5 + $0xf0] sm:$0xff]
        %v256 = vld [vmem:[#allocation5 + $0xf8] sm:$0xff]
        %v257 = vld [vmem:[#allocation5 + $0x100] sm:$0xff]
        %v258 = vld [vmem:[#allocation5 + $0x108] sm:$0xff]
        %v259 = vld [vmem:[#allocation5 + $0x110] sm:$0xff]
        %v260 = vld [vmem:[#allocation5 + $0x118] sm:$0xff]
        %v261 = vld [vmem:[#allocation5 + $0x120] sm:$0xff]
        %v262 = vld [vmem:[#allocation5 + $0x128] sm:$0xff]
        %v263 = vld [vmem:[#allocation5 + $0x130] sm:$0xff]
        %v264 = vld [vmem:[#allocation5 + $0x138] sm:$0xff]
        %v265 = vld [vmem:[#allocation5 + $0x140] sm:$0xff]
        %v266 = vld [vmem:[#allocation5 + $0x148] sm:$0xff]
        %v267 = vld [vmem:[#allocation5 + $0x150] sm:$0xff]
        %v268 = vld [vmem:[#allocation5 + $0x158] sm:$0xff]
        %v269 = vld [vmem:[#allocation5 + $0x160] sm:$0xff]
        %v270 = vld [vmem:[#allocation5 + $0x168] sm:$0xff]
        %v271 = vld [vmem:[#allocation5 + $0x170] sm:$0xff]
        %v272 = vld [vmem:[#allocation5 + $0x178] sm:$0xff]
        %v273 = vld [vmem:[#allocation5 + $0x180] sm:$0xff]
        %v274 = vld [vmem:[#allocation5 + $0x188] sm:$0xff]
        %v275 = vld [vmem:[#allocation5 + $0x190] sm:$0xff]
        %v276 = vld [vmem:[#allocation5 + $0x198] sm:$0xff]
        %v277 = vld [vmem:[#allocation5 + $0x1a0] sm:$0xff]
        %v278 = vld [vmem:[#allocation5 + $0x1a8] sm:$0xff]
        %v279 = vld [vmem:[#allocation5 + $0x1b0] sm:$0xff]
        %v280 = vld [vmem:[#allocation5 + $0x1b8] sm:$0xff]
        %v281 = vld [vmem:[#allocation5 + $0x1c0] sm:$0xff]
        %v282 = vld [vmem:[#allocation5 + $0x1c8] sm:$0xff]
        %v283 = vld [vmem:[#allocation5 + $0x1d0] sm:$0xff]
        %v284 = vld [vmem:[#allocation5 + $0x1d8] sm:$0xff]
        %v285 = vld [vmem:[#allocation5 + $0x1e0] sm:$0xff]
        %v286 = vld [vmem:[#allocation5 + $0x1e8] sm:$0xff]
        %v287 = vld [vmem:[#allocation5 + $0x1f0] sm:$0xff]
        %v288 = vld [vmem:[#allocation5 + $0x1f8] sm:$0xff]
        %v289 = vld [vmem:[#allocation5 + $0x200] sm:$0xff]
        %v290 = vld [vmem:[#allocation5 + $0x208] sm:$0xff]
        %v291 = vld [vmem:[#allocation5 + $0x210] sm:$0xff]
        %v292 = vld [vmem:[#allocation5 + $0x218] sm:$0xff]
        %v293 = vld [vmem:[#allocation5 + $0x220] sm:$0xff]
        %v294 = vld [vmem:[#allocation5 + $0x228] sm:$0xff]
        %v295 = vld [vmem:[#allocation5 + $0x230] sm:$0xff]
        %v296 = vld [vmem:[#allocation5 + $0x238] sm:$0xff]
        %v297 = vld [vmem:[#allocation5 + $0x240] sm:$0xff]
        %v298 = vld [vmem:[#allocation5 + $0x248] sm:$0xff]
        %v299 = vld [vmem:[#allocation5 + $0x250] sm:$0xff]
        %v300 = vld [vmem:[#allocation5 + $0x258] sm:$0xff]
        %v301 = vld [vmem:[#allocation5 + $0x260] sm:$0xff]
        %v302 = vld [vmem:[#allocation5 + $0x268] sm:$0xff]
        %v303 = vld [vmem:[#allocation5 + $0x270] sm:$0xff]
        %v304 = vld [vmem:[#allocation5 + $0x278] sm:$0xff]
        %v305 = vld [vmem:[#allocation5 + $0x280] sm:$0xff]
        %v306 = vld [vmem:[#allocation5 + $0x288] sm:$0xff]
        %v307 = vld [vmem:[#allocation5 + $0x290] sm:$0xff]
        %v308 = vld [vmem:[#allocation5 + $0x298] sm:$0xff]
        %v309 = vld [vmem:[#allocation5 + $0x2a0] sm:$0xff]
        %v310 = vld [vmem:[#allocation5 + $0x2a8] sm:$0xff]
        %v311 = vld [vmem:[#allocation5 + $0x2b0] sm:$0xff]
        %v312 = vld [vmem:[#allocation5 + $0x2b8] sm:$0xff]
        %v313 = vld [vmem:[#allocation5 + $0x2c0] sm:$0xff]
        %v314 = vld [vmem:[#allocation5 + $0x2c8] sm:$0xff]
        %v315 = vld [vmem:[#allocation5 + $0x2d0] sm:$0xff]
        %v316 = vld [vmem:[#allocation5 + $0x2d8] sm:$0xff]
        %v317 = vld [vmem:[#allocation5 + $0x2e0] sm:$0xff]
        %v318 = vld [vmem:[#allocation5 + $0x2e8] sm:$0xff]
        %v319 = vld [vmem:[#allocation5 + $0x2f0] sm:$0xff]
        %v320 = vld [vmem:[#allocation5 + $0x2f8] sm:$0xff]
        %v321 = vld [vmem:[#allocation7] sm:$0x3f]
        %v323 = vlaneseq
        %v324 = vshrl.u32 %v323, 7
        %v325 = vsub.s32 0, %v324
        %v326 = vrot.slane %v321, %v325
        %v327 = vlaneseq
        %v328 = vshrl.u32 %v327, 7
        %v329 = vsub.s32 1, %v328
        %v330 = vrot.slane %v321, %v329
        %v331 = vlaneseq
        %v332 = vshrl.u32 %v331, 7
        %v333 = vsub.s32 2, %v332
        %v334 = vrot.slane %v321, %v333
        %v335 = vlaneseq
        %v336 = vshrl.u32 %v335, 7
        %v337 = vsub.s32 3, %v336
        %v338 = vrot.slane %v321, %v337
        %v339 = vlaneseq
        %v340 = vshrl.u32 %v339, 7
        %v341 = vsub.s32 4, %v340
        %v342 = vrot.slane %v321, %v341
        %v343 = vlaneseq
        %v344 = vshrl.u32 %v343, 7
        %v345 = vsub.s32 5, %v344
        %v346 = vrot.slane %v321, %v345
        %v449 = vunpack.c.l.b16 %v225
        %v450 = vunpack.c.h.b16 %v225
        %v451 = vunpack.c.l.b16 %v226
        %v452 = vunpack.c.h.b16 %v226
        %v453 = vunpack.c.l.b16 %v227
        %v454 = vunpack.c.h.b16 %v227
        %v455 = vunpack.c.l.b16 %v228
        %v456 = vunpack.c.h.b16 %v228
        %v457 = vunpack.c.l.b16 %v229
        %v458 = vunpack.c.h.b16 %v229
        %v459 = vunpack.c.l.b16 %v230
        %v460 = vunpack.c.h.b16 %v230
        %v461 = vunpack.c.l.b16 %v231
        %v462 = vunpack.c.h.b16 %v231
        %v463 = vunpack.c.l.b16 %v232
        %v464 = vunpack.c.h.b16 %v232
        %v465 = vunpack.c.l.b16 %v233
        %v466 = vunpack.c.h.b16 %v233
        %v467 = vunpack.c.l.b16 %v234
        %v468 = vunpack.c.h.b16 %v234
        %v469 = vunpack.c.l.b16 %v235
        %v470 = vunpack.c.h.b16 %v235
        %v471 = vunpack.c.l.b16 %v236
        %v472 = vunpack.c.h.b16 %v236
        %v473 = vunpack.c.l.b16 %v237
        %v474 = vunpack.c.h.b16 %v237
        %v475 = vunpack.c.l.b16 %v238
        %v476 = vunpack.c.h.b16 %v238
        %v477 = vunpack.c.l.b16 %v239
        %v478 = vunpack.c.h.b16 %v239
        %v479 = vunpack.c.l.b16 %v240
        %v480 = vunpack.c.h.b16 %v240
        %v481 = vunpack.c.l.b16 %v241
        %v482 = vunpack.c.h.b16 %v241
        %v483 = vunpack.c.l.b16 %v242
        %v484 = vunpack.c.h.b16 %v242
        %v485 = vunpack.c.l.b16 %v243
        %v486 = vunpack.c.h.b16 %v243
        %v487 = vunpack.c.l.b16 %v244
        %v488 = vunpack.c.h.b16 %v244
        %v489 = vunpack.c.l.b16 %v245
        %v490 = vunpack.c.h.b16 %v245
        %v491 = vunpack.c.l.b16 %v246
        %v492 = vunpack.c.h.b16 %v246
        %v493 = vunpack.c.l.b16 %v247
        %v494 = vunpack.c.h.b16 %v247
        %v495 = vunpack.c.l.b16 %v248
        %v496 = vunpack.c.h.b16 %v248
        %v497 = vunpack.c.l.b16 %v249
        %v498 = vunpack.c.h.b16 %v249
        %v499 = vunpack.c.l.b16 %v250
        %v500 = vunpack.c.h.b16 %v250
        %v501 = vunpack.c.l.b16 %v251
        %v502 = vunpack.c.h.b16 %v251
        %v503 = vunpack.c.l.b16 %v252
        %v504 = vunpack.c.h.b16 %v252
        %v505 = vunpack.c.l.b16 %v253
        %v506 = vunpack.c.h.b16 %v253
        %v507 = vunpack.c.l.b16 %v254
        %v508 = vunpack.c.h.b16 %v254
        %v509 = vunpack.c.l.b16 %v255
        %v510 = vunpack.c.h.b16 %v255
        %v511 = vunpack.c.l.b16 %v256
        %v512 = vunpack.c.h.b16 %v256
        %v513 = vunpack.c.l.b16 %v257
        %v514 = vunpack.c.h.b16 %v257
        %v515 = vunpack.c.l.b16 %v258
        %v516 = vunpack.c.h.b16 %v258
        %v517 = vunpack.c.l.b16 %v259
        %v518 = vunpack.c.h.b16 %v259
        %v519 = vunpack.c.l.b16 %v260
        %v520 = vunpack.c.h.b16 %v260
        %v521 = vunpack.c.l.b16 %v261
        %v522 = vunpack.c.h.b16 %v261
        %v523 = vunpack.c.l.b16 %v262
        %v524 = vunpack.c.h.b16 %v262
        %v525 = vunpack.c.l.b16 %v263
        %v526 = vunpack.c.h.b16 %v263
        %v527 = vunpack.c.l.b16 %v264
        %v528 = vunpack.c.h.b16 %v264
        %v529 = vunpack.c.l.b16 %v265
        %v530 = vunpack.c.h.b16 %v265
        %v531 = vunpack.c.l.b16 %v266
        %v532 = vunpack.c.h.b16 %v266
        %v533 = vunpack.c.l.b16 %v267
        %v534 = vunpack.c.h.b16 %v267
        %v535 = vunpack.c.l.b16 %v268
        %v536 = vunpack.c.h.b16 %v268
        %v537 = vunpack.c.l.b16 %v269
        %v538 = vunpack.c.h.b16 %v269
        %v539 = vunpack.c.l.b16 %v270
        %v540 = vunpack.c.h.b16 %v270
        %v541 = vunpack.c.l.b16 %v271
        %v542 = vunpack.c.h.b16 %v271
        %v543 = vunpack.c.l.b16 %v272
        %v544 = vunpack.c.h.b16 %v272
        %v545 = vunpack.c.l.b16 %v273
        %v546 = vunpack.c.h.b16 %v273
        %v547 = vunpack.c.l.b16 %v274
        %v548 = vunpack.c.h.b16 %v274
        %v549 = vunpack.c.l.b16 %v275
        %v550 = vunpack.c.h.b16 %v275
        %v551 = vunpack.c.l.b16 %v276
        %v552 = vunpack.c.h.b16 %v276
        %v553 = vunpack.c.l.b16 %v277
        %v554 = vunpack.c.h.b16 %v277
        %v555 = vunpack.c.l.b16 %v278
        %v556 = vunpack.c.h.b16 %v278
        %v557 = vunpack.c.l.b16 %v279
        %v558 = vunpack.c.h.b16 %v279
        %v559 = vunpack.c.l.b16 %v280
        %v560 = vunpack.c.h.b16 %v280
        %v561 = vunpack.c.l.b16 %v281
        %v562 = vunpack.c.h.b16 %v281
        %v563 = vunpack.c.l.b16 %v282
        %v564 = vunpack.c.h.b16 %v282
        %v565 = vunpack.c.l.b16 %v283
        %v566 = vunpack.c.h.b16 %v283
        %v567 = vunpack.c.l.b16 %v284
        %v568 = vunpack.c.h.b16 %v284
        %v569 = vunpack.c.l.b16 %v285
        %v570 = vunpack.c.h.b16 %v285
        %v571 = vunpack.c.l.b16 %v286
        %v572 = vunpack.c.h.b16 %v286
        %v573 = vunpack.c.l.b16 %v287
        %v574 = vunpack.c.h.b16 %v287
        %v575 = vunpack.c.l.b16 %v288
        %v576 = vunpack.c.h.b16 %v288
        %v577 = vunpack.c.l.b16 %v289
        %v578 = vunpack.c.h.b16 %v289
        %v579 = vunpack.c.l.b16 %v290
        %v580 = vunpack.c.h.b16 %v290
        %v581 = vunpack.c.l.b16 %v291
        %v582 = vunpack.c.h.b16 %v291
        %v583 = vunpack.c.l.b16 %v292
        %v584 = vunpack.c.h.b16 %v292
        %v585 = vunpack.c.l.b16 %v293
        %v586 = vunpack.c.h.b16 %v293
        %v587 = vunpack.c.l.b16 %v294
        %v588 = vunpack.c.h.b16 %v294
        %v589 = vunpack.c.l.b16 %v295
        %v590 = vunpack.c.h.b16 %v295
        %v591 = vunpack.c.l.b16 %v296
        %v592 = vunpack.c.h.b16 %v296
        %v593 = vunpack.c.l.b16 %v297
        %v594 = vunpack.c.h.b16 %v297
        %v595 = vunpack.c.l.b16 %v298
        %v596 = vunpack.c.h.b16 %v298
        %v597 = vunpack.c.l.b16 %v299
        %v598 = vunpack.c.h.b16 %v299
        %v599 = vunpack.c.l.b16 %v300
        %v600 = vunpack.c.h.b16 %v300
        %v601 = vunpack.c.l.b16 %v301
        %v602 = vunpack.c.h.b16 %v301
        %v603 = vunpack.c.l.b16 %v302
        %v604 = vunpack.c.h.b16 %v302
        %v605 = vunpack.c.l.b16 %v303
        %v606 = vunpack.c.h.b16 %v303
        %v607 = vunpack.c.l.b16 %v304
        %v608 = vunpack.c.h.b16 %v304
        %v609 = vunpack.c.l.b16 %v305
        %v610 = vunpack.c.h.b16 %v305
        %v611 = vunpack.c.l.b16 %v306
        %v612 = vunpack.c.h.b16 %v306
        %v613 = vunpack.c.l.b16 %v307
        %v614 = vunpack.c.h.b16 %v307
        %v615 = vunpack.c.l.b16 %v308
        %v616 = vunpack.c.h.b16 %v308
        %v617 = vunpack.c.l.b16 %v309
        %v618 = vunpack.c.h.b16 %v309
        %v619 = vunpack.c.l.b16 %v310
        %v620 = vunpack.c.h.b16 %v310
        %v621 = vunpack.c.l.b16 %v311
        %v622 = vunpack.c.h.b16 %v311
        %v623 = vunpack.c.l.b16 %v312
        %v624 = vunpack.c.h.b16 %v312
        %v625 = vunpack.c.l.b16 %v313
        %v626 = vunpack.c.h.b16 %v313
        %v627 = vunpack.c.l.b16 %v314
        %v628 = vunpack.c.h.b16 %v314
        %v629 = vunpack.c.l.b16 %v315
        %v630 = vunpack.c.h.b16 %v315
        %v631 = vunpack.c.l.b16 %v316
        %v632 = vunpack.c.h.b16 %v316
        %v633 = vunpack.c.l.b16 %v317
        %v634 = vunpack.c.h.b16 %v317
        %v635 = vunpack.c.l.b16 %v318
        %v636 = vunpack.c.h.b16 %v318
        %v637 = vunpack.c.l.b16 %v319
        %v638 = vunpack.c.h.b16 %v319
        %v639 = vunpack.c.l.b16 %v320
        %v640 = vunpack.c.h.b16 %v320
        %v641 = vpack.c.b16 %v455, %v449
        %v642 = vpack.c.b16 %v456, %v450
        %v643 = vpack.c.b16 %v457, %v451
        %v644 = vpack.c.b16 %v458, %v452
        %v645 = vpack.c.b16 %v459, %v453
        %v646 = vpack.c.b16 %v460, %v454
        %v647 = vpack.c.b16 %v467, %v461
        %v648 = vpack.c.b16 %v468, %v462
        %v649 = vpack.c.b16 %v469, %v463
        %v650 = vpack.c.b16 %v470, %v464
        %v651 = vpack.c.b16 %v471, %v465
        %v652 = vpack.c.b16 %v472, %v466
        %v653 = vpack.c.b16 %v479, %v473
        %v654 = vpack.c.b16 %v480, %v474
        %v655 = vpack.c.b16 %v481, %v475
        %v656 = vpack.c.b16 %v482, %v476
        %v657 = vpack.c.b16 %v483, %v477
        %v658 = vpack.c.b16 %v484, %v478
        %v659 = vpack.c.b16 %v491, %v485
        %v660 = vpack.c.b16 %v492, %v486
        %v661 = vpack.c.b16 %v493, %v487
        %v662 = vpack.c.b16 %v494, %v488
        %v663 = vpack.c.b16 %v495, %v489
        %v664 = vpack.c.b16 %v496, %v490
        %v665 = vpack.c.b16 %v503, %v497
        %v666 = vpack.c.b16 %v504, %v498
        %v667 = vpack.c.b16 %v505, %v499
        %v668 = vpack.c.b16 %v506, %v500
        %v669 = vpack.c.b16 %v507, %v501
        %v670 = vpack.c.b16 %v508, %v502
        %v671 = vpack.c.b16 %v515, %v509
        %v672 = vpack.c.b16 %v516, %v510
        %v673 = vpack.c.b16 %v517, %v511
        %v674 = vpack.c.b16 %v518, %v512
        %v675 = vpack.c.b16 %v519, %v513
        %v676 = vpack.c.b16 %v520, %v514
        %v677 = vpack.c.b16 %v527, %v521
        %v678 = vpack.c.b16 %v528, %v522
        %v679 = vpack.c.b16 %v529, %v523
        %v680 = vpack.c.b16 %v530, %v524
        %v681 = vpack.c.b16 %v531, %v525
        %v682 = vpack.c.b16 %v532, %v526
        %v683 = vpack.c.b16 %v539, %v533
        %v684 = vpack.c.b16 %v540, %v534
        %v685 = vpack.c.b16 %v541, %v535
        %v686 = vpack.c.b16 %v542, %v536
        %v687 = vpack.c.b16 %v543, %v537
        %v688 = vpack.c.b16 %v544, %v538
        %v689 = vpack.c.b16 %v551, %v545
        %v690 = vpack.c.b16 %v552, %v546
        %v691 = vpack.c.b16 %v553, %v547
        %v692 = vpack.c.b16 %v554, %v548
        %v693 = vpack.c.b16 %v555, %v549
        %v694 = vpack.c.b16 %v556, %v550
        %v695 = vpack.c.b16 %v563, %v557
        %v696 = vpack.c.b16 %v564, %v558
        %v697 = vpack.c.b16 %v565, %v559
        %v698 = vpack.c.b16 %v566, %v560
        %v699 = vpack.c.b16 %v567, %v561
        %v700 = vpack.c.b16 %v568, %v562
        %v701 = vpack.c.b16 %v575, %v569
        %v702 = vpack.c.b16 %v576, %v570
        %v703 = vpack.c.b16 %v577, %v571
        %v704 = vpack.c.b16 %v578, %v572
        %v705 = vpack.c.b16 %v579, %v573
        %v706 = vpack.c.b16 %v580, %v574
        %v707 = vpack.c.b16 %v587, %v581
        %v708 = vpack.c.b16 %v588, %v582
        %v709 = vpack.c.b16 %v589, %v583
        %v710 = vpack.c.b16 %v590, %v584
        %v711 = vpack.c.b16 %v591, %v585
        %v712 = vpack.c.b16 %v592, %v586
        %v713 = vpack.c.b16 %v599, %v593
        %v714 = vpack.c.b16 %v600, %v594
        %v715 = vpack.c.b16 %v601, %v595
        %v716 = vpack.c.b16 %v602, %v596
        %v717 = vpack.c.b16 %v603, %v597
        %v718 = vpack.c.b16 %v604, %v598
        %v719 = vpack.c.b16 %v611, %v605
        %v720 = vpack.c.b16 %v612, %v606
        %v721 = vpack.c.b16 %v613, %v607
        %v722 = vpack.c.b16 %v614, %v608
        %v723 = vpack.c.b16 %v615, %v609
        %v724 = vpack.c.b16 %v616, %v610
        %v725 = vpack.c.b16 %v623, %v617
        %v726 = vpack.c.b16 %v624, %v618
        %v727 = vpack.c.b16 %v625, %v619
        %v728 = vpack.c.b16 %v626, %v620
        %v729 = vpack.c.b16 %v627, %v621
        %v730 = vpack.c.b16 %v628, %v622
        %v731 = vpack.c.b16 %v635, %v629
        %v732 = vpack.c.b16 %v636, %v630
        %v733 = vpack.c.b16 %v637, %v631
        %v734 = vpack.c.b16 %v638, %v632
        %v735 = vpack.c.b16 %v639, %v633
        %v736 = vpack.c.b16 %v640, %v634
        %833 = vmatprep.subr.bf16.mxu0 %v684
        %834 = vmatpush1.bf16.msra.mxu0 %v683
        %835 = vmatprep.subr.bf16.mxu0 %v678
        %836 = vmatpush1.bf16.msra.mxu0 %v677
        %837 = vmatprep.subr.bf16.mxu0 %v672
        %838 = vmatpush1.bf16.msra.mxu0 %v671
        %839 = vmatprep.subr.bf16.mxu0 %v666
        %840 = vmatpush1.bf16.msra.mxu0 %v665
        %841 = vmatprep.subr.bf16.mxu0 %v660
        %842 = vmatpush1.bf16.msra.mxu0 %v659
        %843 = vmatprep.subr.bf16.mxu0 %v654
        %844 = vmatpush1.bf16.msra.mxu0 %v653
        %845 = vmatprep.subr.bf16.mxu0 %v648
        %846 = vmatpush1.bf16.msra.mxu0 %v647
        %847 = vmatprep.subr.bf16.mxu0 %v642
        %848 = vmatpush1.bf16.msra.mxu0 %v641
        %849 = vmatprep.subr.bf16.mxu0 %v732
        %850 = vmatpush2.bf16.msra.mxu0 %v731
        %851 = vmatprep.subr.bf16.mxu0 %v726
        %852 = vmatpush2.bf16.msra.mxu0 %v725
        %853 = vmatprep.subr.bf16.mxu0 %v720
        %854 = vmatpush2.bf16.msra.mxu0 %v719
        %855 = vmatprep.subr.bf16.mxu0 %v714
        %856 = vmatpush2.bf16.msra.mxu0 %v713
        %857 = vmatprep.subr.bf16.mxu0 %v708
        %858 = vmatpush2.bf16.msra.mxu0 %v707
        %859 = vmatprep.subr.bf16.mxu0 %v702
        %860 = vmatpush2.bf16.msra.mxu0 %v701
        %861 = vmatprep.subr.bf16.mxu0 %v696
        %862 = vmatpush2.bf16.msra.mxu0 %v695
        %863 = vmatprep.subr.bf16.mxu0 %v690
        %864 = vmatpush2.bf16.msra.mxu0 %v689
        %865 = vmatprep.mubr.bf16.mxu0 %v224
        %866 = vmatmul.mubr.bf16.gmra.mxu0 %v223
        %v867 = vpop.f32.mrf.mxu0
        %v868 = vadd.f32 %v326, %v867
        %v869 = vpop.f32.mrf.mxu0
        %v870 = vadd.f32 %v330, %v869
        %v871 = vpop.f32.mrf.mxu0
        %v872 = vadd.f32 %v326, %v871
        %v873 = vpop.f32.mrf.mxu0
        %v874 = vadd.f32 %v330, %v873
        %875 = vdwg.mxu0
        %876 = vmatprep.subr.bf16.mxu0 %v686
        %877 = vmatpush1.bf16.msra.mxu0 %v685
        %878 = vmatprep.subr.bf16.mxu0 %v680
        %879 = vmatpush1.bf16.msra.mxu0 %v679
        %880 = vmatprep.subr.bf16.mxu0 %v674
        %881 = vmatpush1.bf16.msra.mxu0 %v673
        %882 = vmatprep.subr.bf16.mxu0 %v668
        %883 = vmatpush1.bf16.msra.mxu0 %v667
        %884 = vmatprep.subr.bf16.mxu0 %v662
        %885 = vmatpush1.bf16.msra.mxu0 %v661
        %886 = vmatprep.subr.bf16.mxu0 %v656
        %887 = vmatpush1.bf16.msra.mxu0 %v655
        %888 = vmatprep.subr.bf16.mxu0 %v650
        %889 = vmatpush1.bf16.msra.mxu0 %v649
        %890 = vmatprep.subr.bf16.mxu0 %v644
        %891 = vmatpush1.bf16.msra.mxu0 %v643
        %892 = vmatprep.subr.bf16.mxu0 %v734
        %893 = vmatpush2.bf16.msra.mxu0 %v733
        %894 = vmatprep.subr.bf16.mxu0 %v728
        %895 = vmatpush2.bf16.msra.mxu0 %v727
        %896 = vmatprep.subr.bf16.mxu0 %v722
        %897 = vmatpush2.bf16.msra.mxu0 %v721
        %898 = vmatprep.subr.bf16.mxu0 %v716
        %899 = vmatpush2.bf16.msra.mxu0 %v715
        %900 = vmatprep.subr.bf16.mxu0 %v710
        %901 = vmatpush2.bf16.msra.mxu0 %v709
        %902 = vmatprep.subr.bf16.mxu0 %v704
        %903 = vmatpush2.bf16.msra.mxu0 %v703
        %904 = vmatprep.subr.bf16.mxu0 %v698
        %905 = vmatpush2.bf16.msra.mxu0 %v697
        %906 = vmatprep.subr.bf16.mxu0 %v692
        %907 = vmatpush2.bf16.msra.mxu0 %v691
        %908 = vmatprep.mubr.bf16.mxu0 %v224
        %909 = vmatmul.mubr.bf16.gmra.mxu0 %v223
        %v910 = vpop.f32.mrf.mxu0
        %v911 = vadd.f32 %v334, %v910
        %v912 = vpop.f32.mrf.mxu0
        %v913 = vadd.f32 %v338, %v912
        %v914 = vpop.f32.mrf.mxu0
        %v915 = vadd.f32 %v334, %v914
        %v916 = vpop.f32.mrf.mxu0
        %v917 = vadd.f32 %v338, %v916
        %918 = vdwg.mxu0
        %919 = vmatprep.subr.bf16.mxu0 %v688
        %920 = vmatpush1.bf16.msra.mxu0 %v687
        %921 = vmatprep.subr.bf16.mxu0 %v682
        %922 = vmatpush1.bf16.msra.mxu0 %v681
        %923 = vmatprep.subr.bf16.mxu0 %v676
        %924 = vmatpush1.bf16.msra.mxu0 %v675
        %925 = vmatprep.subr.bf16.mxu0 %v670
        %926 = vmatpush1.bf16.msra.mxu0 %v669
        %927 = vmatprep.subr.bf16.mxu0 %v664
        %928 = vmatpush1.bf16.msra.mxu0 %v663
        %929 = vmatprep.subr.bf16.mxu0 %v658
        %930 = vmatpush1.bf16.msra.mxu0 %v657
        %931 = vmatprep.subr.bf16.mxu0 %v652
        %932 = vmatpush1.bf16.msra.mxu0 %v651
        %933 = vmatprep.subr.bf16.mxu0 %v646
        %934 = vmatpush1.bf16.msra.mxu0 %v645
        %935 = vmatprep.subr.bf16.mxu0 %v736
        %936 = vmatpush2.bf16.msra.mxu0 %v735
        %937 = vmatprep.subr.bf16.mxu0 %v730
        %938 = vmatpush2.bf16.msra.mxu0 %v729
        %939 = vmatprep.subr.bf16.mxu0 %v724
        %940 = vmatpush2.bf16.msra.mxu0 %v723
        %941 = vmatprep.subr.bf16.mxu0 %v718
        %942 = vmatpush2.bf16.msra.mxu0 %v717
        %943 = vmatprep.subr.bf16.mxu0 %v712
        %944 = vmatpush2.bf16.msra.mxu0 %v711
        %945 = vmatprep.subr.bf16.mxu0 %v706
        %946 = vmatpush2.bf16.msra.mxu0 %v705
        %947 = vmatprep.subr.bf16.mxu0 %v700
        %948 = vmatpush2.bf16.msra.mxu0 %v699
        %949 = vmatprep.subr.bf16.mxu0 %v694
        %950 = vmatpush2.bf16.msra.mxu0 %v693
        %951 = vmatprep.mubr.bf16.mxu0 %v224
        %952 = vmatmul.mubr.bf16.gmra.mxu0 %v223
        %v953 = vpop.f32.mrf.mxu0
        %v954 = vadd.f32 %v342, %v953
        %v955 = vpop.f32.mrf.mxu0
        %v956 = vadd.f32 %v346, %v955
        %v957 = vpop.f32.mrf.mxu0
        %v958 = vadd.f32 %v342, %v957
        %v959 = vpop.f32.mrf.mxu0
        %v960 = vadd.f32 %v346, %v959
        %961 = vdwg.mxu0
        %v962 = vpack.c.bf16 %v872, %v868
        %v963 = vpack.c.bf16 %v874, %v870
        %v964 = vpack.c.bf16 %v915, %v911
        %v965 = vpack.c.bf16 %v917, %v913
        %v966 = vpack.c.bf16 %v958, %v954
        %v967 = vpack.c.bf16 %v960, %v956
        %v974 = vunpack.c.l.b16 %v962
        %v975 = vunpack.c.l.b16 %v963
        %v976 = vunpack.c.l.b16 %v964
        %v977 = vunpack.c.l.b16 %v965
        %v978 = vunpack.c.l.b16 %v966
        %v979 = vunpack.c.l.b16 %v967
        %v980 = vunpack.c.h.b16 %v962
        %v981 = vunpack.c.h.b16 %v963
        %v982 = vunpack.c.h.b16 %v964
        %v983 = vunpack.c.h.b16 %v965
        %v984 = vunpack.c.h.b16 %v966
        %v985 = vunpack.c.h.b16 %v967
        %v986 = vpack.c.b16 %v975, %v974
        %v987 = vpack.c.b16 %v977, %v976
        %v988 = vpack.c.b16 %v979, %v978
        %v989 = vpack.c.b16 %v981, %v980
        %v990 = vpack.c.b16 %v983, %v982
        %v991 = vpack.c.b16 %v985, %v984
        %998 = vst [vmem:[%s216] sm:$0xff] %v986
        %999 = vst [vmem:[%s216 + $0x8] sm:$0xff] %v987
        %1000 = vst [vmem:[%s216 + $0x10] sm:$0xff] %v988
        %1001 = vst [vmem:[%s216 + $0x18] sm:$0xff] %v989
        %1002 = vst [vmem:[%s216 + $0x20] sm:$0xff] %v990
        %1003 = vst [vmem:[%s216 + $0x28] sm:$0xff] %v991
        %s1004 = sand.u32 %s97, 1
        %s1005 = scalar_lea.sflag [#allocation4], %s1004
        %s1006 = sand.u32 %s97, 1
        %s1007 = smul.addr %s1006, 48
        %s1008 = scalar_lea.vmem [#allocation8], %s1007
        // Predicated region
        $region45: #{tpu_custom_call.1} parent=31 // pred_check
          %p1009 = pneg %p107
        $region46: #{tpu_custom_call.1} parent=31 // pred_check_branch
          %1011 = sbr.rel (%p1009) target = $region48
        $region47: #{tpu_custom_call.1} parent=31 // pred_region
          %s1012 = smul.u32 2, %s21
          %s1014 = ssub.s32 768, 768
          %1015 = vsyncadd %s1005, %s1014
          %s1016 = smul.addr %s1012, 6
          %s1017 = smul.addr %s1016, 64
          %s1018 = scalar_lea.hbm %s3, %s1017
          %s1019 = sshll.u32 %s1008, 4
          %s1020 = int_to_ptr.vmem [resolvable:$true] %s1019
          %1025 = dma.vmem_to_hbm [thread:$0]  %s1020, 768, %s1018, %s1005, 384, 384, 24
        $region48: #{tpu_custom_call.1} parent=31 // pred_fallthru
          _
      $region32: #{tpu_custom_call.1} parent=5 // pred_fallthru
        _
      %p1026 = scmp.le.s32.totalorder 2, %s16
      // Predicated region
      $region49: #{tpu_custom_call.1} parent=5 // pred_check
        %p1027 = pneg %p1026
      $region50: #{tpu_custom_call.1} parent=5 // pred_check_branch
        %1029 = sbr.rel (%p1027) target = $region52
      $region51: #{tpu_custom_call.1} parent=5 // pred_region
        %s1030 = ssub.s32 %s16, 2
        // Predicated region
        $region53: #{tpu_custom_call.1} parent=51 // pred_check
          %p1031 = pneg %p113
        $region54: #{tpu_custom_call.1} parent=51 // pred_check_branch
          %1033 = sbr.rel (%p1031) target = $region56
        $region55: #{tpu_custom_call.1} parent=51 // pred_region
          %s1034 = sand.u32 %s98, 1
          %s1035 = scalar_lea.sflag [#allocation4], %s1034
          %s1036 = sand.u32 %s98, 1
          %s1037 = smul.addr %s1036, 48
          %s1038 = scalar_lea.vmem [#allocation8], %s1037
          %1039 = dma.done %s1035, 768
        $region56: #{tpu_custom_call.1} parent=51 // pred_fallthru
          _
      $region52: #{tpu_custom_call.1} parent=5 // pred_fallthru
        _
    $region6: #{tpu_custom_call.1} parent=1 // loop_footer
      %s20 = sadd.s32 1, %s16
    $region7: #{tpu_custom_call.1} parent=1 // loop_footer_branch
      %15 = sbr.rel target = $region3
    $region8: #{tpu_custom_call.1} parent=1 // loop_exit
      _
    %1040 = vsyncpa [#allocation3], 1
    %s1041 = scalar_lea.sflag [#allocation3], 1
    %1042 = vsyncpa %s1041, 1
    %1043 = vsyncpa [#allocation6], 1
    %1044 = vsyncpa [#allocation4], 1
    %s1045 = scalar_lea.sflag [#allocation4], 1
    %1046 = vsyncpa %s1045, 1

</llo_original>
